<compile_context>
chip_gen: v5e
topology: v5e:2x2
jax: 0.10.0
libtpu: 0.0.40
codegen_flags: <defaults>
</compile_context>

<pallas_src>
import functools

import jax
import jax.numpy as jnp
import numpy as np
from jax.experimental import pallas as pl
from jax.experimental.pallas import tpu as pltpu


def _round_up(v, m):
    return ((v + m - 1) // m) * m


def _mlp_kernel(x_ref,
                wc_ref, bc_ref,      # trunk: n_input -> 64
                w1_ref, b1_ref,      # heads layer 1 (concat): 64 -> 256
                w2_ref, b2_ref,      # heads layer 2 (block-diag): 256 -> 48
                w3_ref, b3_ref,      # heads layer 3 (block-diag, lane-padded): 48 -> 128
                o_ref,
                *, mm_dtype):
    f32 = jnp.float32

    # --- common trunk: Linear + ReLU (+ Dropout == identity in eval) ---
    x = x_ref[...].astype(mm_dtype)
    h = jnp.dot(x, wc_ref[...], preferred_element_type=f32) + bc_ref[...]
    h = jnp.maximum(h, 0.0)

    # --- heads, first layer fused: [h0 | h1] = relu(h @ [w00 | w10] + [b00 | b10]) ---
    h01 = jnp.dot(h.astype(mm_dtype), w1_ref[...], preferred_element_type=f32) + b1_ref[...]
    h01 = jnp.maximum(h01, 0.0)

    # --- heads, second layer fused as block-diagonal matmul (off-diag blocks are 0) ---
    h2 = jnp.dot(h01.astype(mm_dtype), w2_ref[...], preferred_element_type=f32) + b2_ref[...]
    h2 = jnp.maximum(h2, 0.0)

    # --- heads, output layer fused as block-diagonal matmul, padded to 128 lanes ---
    o = jnp.dot(h2.astype(mm_dtype), w3_ref[...], preferred_element_type=f32) + b3_ref[...]
    o_ref[...] = o.astype(o_ref.dtype)


def multihead_mlp(x, params, *, tile_b=1024, use_bf16=True):
    """x: [B, n_input] float32. params: dict of weights/biases (features-last).
    Returns (out0 [B, n_out0], out1 [B, n_out1])."""
    B, n_input = x.shape
    n_out0 = params["b02"].shape[-1]
    n_out1 = params["b12"].shape[-1]
    d00 = params["w00"].shape[1]           # 128 (head-0 hidden 1)
    d10 = params["w10"].shape[1]           # 128 (head-1 hidden 1)
    d01 = params["w01"].shape[1]           # 16  (head-0 hidden 2)
    d11 = params["w11"].shape[1]           # 32  (head-1 hidden 2)
    out_pad = _round_up(n_out0 + n_out1, 128)   # lane-dense output slab

    # ---- pack / fuse weights (plain JAX, tiny arrays) ----
    wc, bc = params["wc"], params["bc"]
    # heads layer 1: concatenate along the output dim -> one 64->256 matmul.
    w1 = jnp.concatenate([params["w00"], params["w10"]], axis=1)        # [64, 256]
    b1 = jnp.concatenate([params["b00"], params["b10"]], axis=1)        # [1, 256]
    # heads layer 2: block-diagonal -> one 256->48 matmul.
    w2 = jnp.zeros((d00 + d10, d01 + d11), jnp.float32)
    w2 = w2.at[:d00, :d01].set(params["w01"])
    w2 = w2.at[d00:, d01:].set(params["w11"])
    b2 = jnp.concatenate([params["b01"], params["b11"]], axis=1)        # [1, 48]
    # heads layer 3: block-diagonal, padded to 128 output lanes.
    w3 = jnp.zeros((d01 + d11, out_pad), jnp.float32)
    w3 = w3.at[:d01, :n_out0].set(params["w02"])
    w3 = w3.at[d01:, n_out0:n_out0 + n_out1].set(params["w12"])
    b3 = jnp.zeros((1, out_pad), jnp.float32)
    b3 = b3.at[:, :n_out0].set(params["b02"])
    b3 = b3.at[:, n_out0:n_out0 + n_out1].set(params["b12"])

    mm_dtype = jnp.bfloat16 if use_bf16 else x.dtype
    wc_m, w1_m, w2_m, w3_m = (w.astype(mm_dtype) for w in (wc, w1, w2, w3))

    # ---- tile selection: multiple of 8, and keep >=2 grid steps (v7x megacore) ----
    tile_b = _round_up(max(tile_b, 8), 8)
    tb = max(8, min(tile_b, _round_up((B + 1) // 2, 8)))
    Bp = _round_up(B, tb)
    if Bp != B:
        x = jnp.pad(x, ((0, Bp - B), (0, 0)))     # zero rows, sliced away below
    grid = (Bp // tb,)

    weight_args = (wc_m, bc, w1_m, b1, w2_m, b2, w3_m, b3)
    full2d = lambda arr: pl.BlockSpec(arr.shape, lambda i: (0, 0))
    in_specs = [pl.BlockSpec((tb, n_input), lambda i: (i, 0))] + \
               [full2d(a) for a in weight_args]
    out_specs = pl.BlockSpec((tb, out_pad), lambda i: (i, 0))
    out_shape = jax.ShapeDtypeStruct((Bp, out_pad), x.dtype)

    out = pl.pallas_call(
        functools.partial(_mlp_kernel, mm_dtype=mm_dtype),
        out_shape=out_shape,
        grid_spec=pltpu.PrefetchScalarGridSpec(
            num_scalar_prefetch=0,
            grid=grid,
            in_specs=in_specs,
            out_specs=out_specs,
        ),
        compiler_params=pltpu.CompilerParams(
            dimension_semantics=("parallel",),
            vmem_limit_bytes=48 * 1024 * 1024,
        ),
    )(x, *weight_args)

    return out[:B, :n_out0], out[:B, n_out0:n_out0 + n_out1]


def init_params(key, n_input=32,
                n_outputs=(16, 32),
                common_hidden=(64,),
                head_hidden=((128, 16), (128, 32))):
    """Deterministic synthetic parameters. Weight layout: [in, out]."""
    def linear(key, fan_in, fan_out):
        kw, kb = jax.random.split(key)
        bound = 1.0 / np.sqrt(fan_in)
        w = jax.random.uniform(kw, (fan_in, fan_out), jnp.float32, -bound, bound)
        b = jax.random.uniform(kb, (1, fan_out), jnp.float32, -bound, bound)
        return w, b

    keys = jax.random.split(key, 7)
    p = {}
    # common trunk: n_input -> 64
    p["wc"], p["bc"] = linear(keys[0], n_input, common_hidden[0])
    # head 0: 64 -> 128 -> 16 -> 16
    dims0 = (common_hidden[-1],) + head_hidden[0] + (n_outputs[0],)
    p["w00"], p["b00"] = linear(keys[1], dims0[0], dims0[1])
    p["w01"], p["b01"] = linear(keys[2], dims0[1], dims0[2])
    p["w02"], p["b02"] = linear(keys[3], dims0[2], dims0[3])
    # head 1: 64 -> 128 -> 32 -> 32
    dims1 = (common_hidden[-1],) + head_hidden[1] + (n_outputs[1],)
    p["w10"], p["b10"] = linear(keys[4], dims1[0], dims1[1])
    p["w11"], p["b11"] = linear(keys[5], dims1[1], dims1[2])
    p["w12"], p["b12"] = linear(keys[6], dims1[2], dims1[3])
    return p


def reference(x, p, use_bf16=True):
    """Pure-JAX reference with the same mixed precision as the kernel
    (bf16 matmul operands, f32 accumulation, f32 bias/ReLU)."""
    mm = jnp.bfloat16 if use_bf16 else x.dtype
    lin = lambda a, w, b: jnp.dot(a.astype(mm), w.astype(mm),
                                  preferred_element_type=jnp.float32) + b
    relu = lambda v: jnp.maximum(v, 0.0)
    h = relu(lin(x, p["wc"], p["bc"]))
    h0 = relu(lin(h, p["w00"], p["b00"]))
    h0 = relu(lin(h0, p["w01"], p["b01"]))
    o0 = lin(h0, p["w02"], p["b02"])
    h1 = relu(lin(h, p["w10"], p["b10"]))
    h1 = relu(lin(h1, p["w11"], p["b11"]))
    o1 = lin(h1, p["w12"], p["b12"])
    return o0, o1


if __name__ == "__main__":
    key = jax.random.PRNGKey(0)
    kx, kp = jax.random.split(key)

    B, n_input = 16, 32
    x = jax.random.normal(kx, (B, n_input), jnp.float32)
    params = init_params(kp, n_input=n_input)

    out0, out1 = multihead_mlp(x, params)          # tile clamps to 8 -> grid=(2,)
    out0, out1 = jax.block_until_ready((out0, out1))

    ref0, ref1 = reference(x, params, use_bf16=True)
    np.testing.assert_allclose(np.asarray(out0), np.asarray(ref0), rtol=1e-2, atol=1e-2)
    np.testing.assert_allclose(np.asarray(out1), np.asarray(ref1), rtol=1e-2, atol=1e-2)

    print("KERNEL_OK")
</pallas_src>

<mosaic_0001>
module attributes {stable_mosaic.version = 11 : i64} {
  func.func @_mlp_kernel(%arg0: i32, %arg1: memref<8x32xf32, #tpu.memory_space<vmem>>, %arg2: memref<32x64xbf16, #tpu.memory_space<vmem>>, %arg3: memref<1x64xf32, #tpu.memory_space<vmem>>, %arg4: memref<64x256xbf16, #tpu.memory_space<vmem>>, %arg5: memref<1x256xf32, #tpu.memory_space<vmem>>, %arg6: memref<256x48xbf16, #tpu.memory_space<vmem>>, %arg7: memref<1x48xf32, #tpu.memory_space<vmem>>, %arg8: memref<48x128xbf16, #tpu.memory_space<vmem>>, %arg9: memref<1x128xf32, #tpu.memory_space<vmem>>, %arg10: memref<8x128xf32, #tpu.memory_space<vmem>>) attributes {dimension_semantics = [#tpu.dimension_semantics<parallel>], iteration_bounds = array<i64: 2>, scalar_prefetch = 0 : i64, scratch_operands = 0 : i64, tpu.core_type = #tpu.core_type<tc>, window_params = [{transform_indices = @transform_0, window_bounds = array<i64: 8, 32>}, {pipeline_mode = #tpu.pipeline_mode<synchronous>, transform_indices = @transform_1, window_bounds = array<i64: 32, 64>}, {pipeline_mode = #tpu.pipeline_mode<synchronous>, transform_indices = @transform_2, window_bounds = array<i64: 1, 64>}, {pipeline_mode = #tpu.pipeline_mode<synchronous>, transform_indices = @transform_3, window_bounds = array<i64: 64, 256>}, {pipeline_mode = #tpu.pipeline_mode<synchronous>, transform_indices = @transform_4, window_bounds = array<i64: 1, 256>}, {pipeline_mode = #tpu.pipeline_mode<synchronous>, transform_indices = @transform_5, window_bounds = array<i64: 256, 48>}, {pipeline_mode = #tpu.pipeline_mode<synchronous>, transform_indices = @transform_6, window_bounds = array<i64: 1, 48>}, {pipeline_mode = #tpu.pipeline_mode<synchronous>, transform_indices = @transform_7, window_bounds = array<i64: 48, 128>}, {pipeline_mode = #tpu.pipeline_mode<synchronous>, transform_indices = @transform_8, window_bounds = array<i64: 1, 128>}, {transform_indices = @transform_9, window_bounds = array<i64: 8, 128>}]} {
    %c0 = arith.constant 0 : index
    %c0_0 = arith.constant 0 : index
    %0 = vector.load %arg1[%c0, %c0_0] : memref<8x32xf32, #tpu.memory_space<vmem>>, vector<8x32xf32>
    %1 = arith.truncf %0 : vector<8x32xf32> to vector<8x32xbf16>
    %c0_1 = arith.constant 0 : index
    %c0_2 = arith.constant 0 : index
    %2 = vector.load %arg2[%c0_1, %c0_2] : memref<32x64xbf16, #tpu.memory_space<vmem>>, vector<32x64xbf16>
    %cst = arith.constant dense<0.000000e+00> : vector<8x64xf32>
    %3 = tpu.matmul %1, %2, %cst {dimension_numbers = #tpu.dot_dimension_numbers<[1], [0], [0], [1], [0, 0, 1, 1], [], []>} : vector<8x32xbf16>, vector<32x64xbf16>, vector<8x64xf32> -> vector<8x64xf32>
    %c0_3 = arith.constant 0 : index
    %c0_4 = arith.constant 0 : index
    %4 = vector.load %arg3[%c0_3, %c0_4] : memref<1x64xf32, #tpu.memory_space<vmem>>, vector<1x64xf32>
    %5 = vector.broadcast %4 : vector<1x64xf32> to vector<8x64xf32>
    %6 = arith.addf %3, %5 : vector<8x64xf32>
    %cst_5 = arith.constant 0.000000e+00 : f32
    %7 = vector.broadcast %cst_5 : f32 to vector<8x64xf32>
    %8 = arith.maximumf %6, %7 : vector<8x64xf32>
    %9 = arith.truncf %8 : vector<8x64xf32> to vector<8x64xbf16>
    %c0_6 = arith.constant 0 : index
    %c0_7 = arith.constant 0 : index
    %10 = vector.load %arg4[%c0_6, %c0_7] : memref<64x256xbf16, #tpu.memory_space<vmem>>, vector<64x256xbf16>
    %cst_8 = arith.constant dense<0.000000e+00> : vector<8x256xf32>
    %11 = tpu.matmul %9, %10, %cst_8 {dimension_numbers = #tpu.dot_dimension_numbers<[1], [0], [0], [1], [0, 0, 1, 1], [], []>} : vector<8x64xbf16>, vector<64x256xbf16>, vector<8x256xf32> -> vector<8x256xf32>
    %c0_9 = arith.constant 0 : index
    %c0_10 = arith.constant 0 : index
    %12 = vector.load %arg5[%c0_9, %c0_10] : memref<1x256xf32, #tpu.memory_space<vmem>>, vector<1x256xf32>
    %13 = vector.broadcast %12 : vector<1x256xf32> to vector<8x256xf32>
    %14 = arith.addf %11, %13 : vector<8x256xf32>
    %cst_11 = arith.constant 0.000000e+00 : f32
    %15 = vector.broadcast %cst_11 : f32 to vector<8x256xf32>
    %16 = arith.maximumf %14, %15 : vector<8x256xf32>
    %17 = arith.truncf %16 : vector<8x256xf32> to vector<8x256xbf16>
    %c0_12 = arith.constant 0 : index
    %c0_13 = arith.constant 0 : index
    %18 = vector.load %arg6[%c0_12, %c0_13] : memref<256x48xbf16, #tpu.memory_space<vmem>>, vector<256x48xbf16>
    %cst_14 = arith.constant dense<0.000000e+00> : vector<8x48xf32>
    %19 = tpu.matmul %17, %18, %cst_14 {dimension_numbers = #tpu.dot_dimension_numbers<[1], [0], [0], [1], [0, 0, 1, 1], [], []>} : vector<8x256xbf16>, vector<256x48xbf16>, vector<8x48xf32> -> vector<8x48xf32>
    %c0_15 = arith.constant 0 : index
    %c0_16 = arith.constant 0 : index
    %20 = vector.load %arg7[%c0_15, %c0_16] : memref<1x48xf32, #tpu.memory_space<vmem>>, vector<1x48xf32>
    %21 = vector.broadcast %20 : vector<1x48xf32> to vector<8x48xf32>
    %22 = arith.addf %19, %21 : vector<8x48xf32>
    %cst_17 = arith.constant 0.000000e+00 : f32
    %23 = vector.broadcast %cst_17 : f32 to vector<8x48xf32>
    %24 = arith.maximumf %22, %23 : vector<8x48xf32>
    %25 = arith.truncf %24 : vector<8x48xf32> to vector<8x48xbf16>
    %c0_18 = arith.constant 0 : index
    %c0_19 = arith.constant 0 : index
    %26 = vector.load %arg8[%c0_18, %c0_19] : memref<48x128xbf16, #tpu.memory_space<vmem>>, vector<48x128xbf16>
    %cst_20 = arith.constant dense<0.000000e+00> : vector<8x128xf32>
    %27 = tpu.matmul %25, %26, %cst_20 {dimension_numbers = #tpu.dot_dimension_numbers<[1], [0], [0], [1], [0, 0, 1, 1], [], []>} : vector<8x48xbf16>, vector<48x128xbf16>, vector<8x128xf32> -> vector<8x128xf32>
    %c0_21 = arith.constant 0 : index
    %c0_22 = arith.constant 0 : index
    %28 = vector.load %arg9[%c0_21, %c0_22] : memref<1x128xf32, #tpu.memory_space<vmem>>, vector<1x128xf32>
    %29 = vector.broadcast %28 : vector<1x128xf32> to vector<8x128xf32>
    %30 = arith.addf %27, %29 : vector<8x128xf32>
    %c0_23 = arith.constant 0 : index
    %c0_24 = arith.constant 0 : index
    %31 = vector.load %arg10[%c0_23, %c0_24] : memref<8x128xf32, #tpu.memory_space<vmem>>, vector<8x128xf32>
    tpu.vector_store %arg10[%c0_23, %c0_24], %30 {strides = array<i32>} : memref<8x128xf32, #tpu.memory_space<vmem>>, vector<8x128xf32>,
    return
  }
  func.func @transform_0(%arg0: i32) -> (i32, i32) {
    %c0_i32 = arith.constant 0 : i32
    %c0_i32_0 = arith.constant 0 : i32
    return %arg0, %c0_i32 : i32, i32
  }
  func.func @transform_1(%arg0: i32) -> (i32, i32) {
    %c0_i32 = arith.constant 0 : i32
    %c0_i32_0 = arith.constant 0 : i32
    %c0_i32_1 = arith.constant 0 : i32
    return %c0_i32, %c0_i32_0 : i32, i32
  }
  func.func @transform_2(%arg0: i32) -> (i32, i32) {
    %c0_i32 = arith.constant 0 : i32
    %c0_i32_0 = arith.constant 0 : i32
    %c0_i32_1 = arith.constant 0 : i32
    return %c0_i32, %c0_i32_0 : i32, i32
  }
  func.func @transform_3(%arg0: i32) -> (i32, i32) {
    %c0_i32 = arith.constant 0 : i32
    %c0_i32_0 = arith.constant 0 : i32
    %c0_i32_1 = arith.constant 0 : i32
    return %c0_i32, %c0_i32_0 : i32, i32
  }
  func.func @transform_4(%arg0: i32) -> (i32, i32) {
    %c0_i32 = arith.constant 0 : i32
    %c0_i32_0 = arith.constant 0 : i32
    %c0_i32_1 = arith.constant 0 : i32
    return %c0_i32, %c0_i32_0 : i32, i32
  }
  func.func @transform_5(%arg0: i32) -> (i32, i32) {
    %c0_i32 = arith.constant 0 : i32
    %c0_i32_0 = arith.constant 0 : i32
    %c0_i32_1 = arith.constant 0 : i32
    return %c0_i32, %c0_i32_0 : i32, i32
  }
  func.func @transform_6(%arg0: i32) -> (i32, i32) {
    %c0_i32 = arith.constant 0 : i32
    %c0_i32_0 = arith.constant 0 : i32
    %c0_i32_1 = arith.constant 0 : i32
    return %c0_i32, %c0_i32_0 : i32, i32
  }
  func.func @transform_7(%arg0: i32) -> (i32, i32) {
    %c0_i32 = arith.constant 0 : i32
    %c0_i32_0 = arith.constant 0 : i32
    %c0_i32_1 = arith.constant 0 : i32
    return %c0_i32, %c0_i32_0 : i32, i32
  }
  func.func @transform_8(%arg0: i32) -> (i32, i32) {
    %c0_i32 = arith.constant 0 : i32
    %c0_i32_0 = arith.constant 0 : i32
    %c0_i32_1 = arith.constant 0 : i32
    return %c0_i32, %c0_i32_0 : i32, i32
  }
  func.func @transform_9(%arg0: i32) -> (i32, i32) {
    %c0_i32 = arith.constant 0 : i32
    %c0_i32_0 = arith.constant 0 : i32
    return %arg0, %c0_i32 : i32, i32
  }
}

</mosaic_0001>

<llo_original>
// kernel: tpu_custom_call.1
$region0: #{tpu_custom_call.1}
  #allocation0 [shape = 'u32[]', space=smem, size = 0x4, offset = 0x4, fixed_abs, tag = 'smem constant byte address 0x4 - core index']
  #allocation1 [shape = 'u32[72,128]{1,0:T(1,128)}', space=vmem, size = 0x9000, scoped, tag = 'internal scratch']
  %s0 = inlined_call_operand.vmem [shape: f32[16,32], index: 0, kind: input, shape index: {}]
  %s1 = inlined_call_operand.vmem [shape: bf16[32,64], index: 1, kind: input, shape index: {}]
  %s2 = inlined_call_operand.vmem [shape: f32[1,64], index: 2, kind: input, shape index: {}]
  %s3 = inlined_call_operand.vmem [shape: bf16[64,256], index: 3, kind: input, shape index: {}]
  %s4 = inlined_call_operand.vmem [shape: f32[1,256], index: 4, kind: input, shape index: {}]
  %s5 = inlined_call_operand.vmem [shape: bf16[256,48], index: 5, kind: input, shape index: {}]
  %s6 = inlined_call_operand.vmem [shape: f32[1,48], index: 6, kind: input, shape index: {}]
  %s7 = inlined_call_operand.vmem [shape: bf16[48,128], index: 7, kind: input, shape index: {}]
  %s8 = inlined_call_operand.vmem [shape: f32[1,128], index: 8, kind: input, shape index: {}]
  %s9 = inlined_call_operand.hbm [shape: f32[16,128], index: 9, kind: output, shape index: {}]
  %s10 = sld [smem:[#allocation0]]
  $region69: #{tpu_custom_call.1} parent=0
    _
  %s12 = ssub.s32 1, %s10
  %s13 = scalar_select 0, %s12, %s10
  $region1: #{tpu_custom_call.1} parent=0
    #allocation2 [shape = 'u8[8192]{0}', space=vmem, size = 0x2000, scoped, tag = 'output window, operand 0']
    #allocation3 [shape = 's32[2]{0}', space=sflag, size = 0x8, scoped, tag = 'scoped memory for tpu_custom_call.1']
    %14 = vsyncpa [#allocation3], 0
    %s15 = scalar_lea.sflag [#allocation3], 1
    %16 = vsyncpa %s15, 0
    loop: start=0, step=1, limit=4
    $region2: #{tpu_custom_call.1} parent=1 // loop_pre_header
      _
    $region3: #{tpu_custom_call.1} parent=1 // loop_header
      %s18 = sphi 0, %s22
      %p19 = scmp.ge.s32.totalorder %s18, 4
      %s28 = sphi 0, %s30
      %s31 = sphi 0, %s28
      %s32 = sphi 0, %s31
      %s48 = sphi 0, %s32
      %s52 = sphi 0, %s52
      %s54 = sphi 0, %s52
      %s55 = sphi 0, %s54
      %s69 = sphi 0, %s55
      %s73 = sphi 0, %s73
      %s75 = sphi 0, %s73
      %s76 = sphi 0, %s75
      %s90 = sphi 0, %s76
      %s94 = sphi 0, %s94
      %s96 = sphi 0, %s94
      %s97 = sphi 0, %s96
      %s111 = sphi 0, %s97
      %s115 = sphi 0, %s115
      %s117 = sphi 0, %s115
      %s118 = sphi 0, %s117
      %s132 = sphi 0, %s118
      %s136 = sphi 0, %s136
      %s138 = sphi 0, %s136
      %s139 = sphi 0, %s138
      %s153 = sphi 0, %s139
      %s157 = sphi 0, %s157
      %s159 = sphi 0, %s157
      %s160 = sphi 0, %s159
      %s174 = sphi 0, %s160
      %s178 = sphi 0, %s178
      %s180 = sphi 0, %s178
      %s181 = sphi 0, %s180
      %s195 = sphi 0, %s181
      %s199 = sphi 0, %s199
      %s201 = sphi 0, %s199
      %s202 = sphi 0, %s201
      %s216 = sphi 0, %s202
      %s222 = sphi 0, %s224
      %s225 = sphi 0, %s222
      %s226 = sphi 0, %s225
      %s242 = sphi 0, %s226
    $region4: #{tpu_custom_call.1} parent=1 // loop_header_branch
      %21 = sbr.rel (%p19) target = $region8
    $region5: #{tpu_custom_call.1} parent=1 // loop_body
      %s23 = ssub.s32 %s18, 1
      %s24 = ssub.s32 %s18, 2
      %s25 = sadd.s32 %s18, 1
      %s26 = ssub.s32 %s18, %s25
      %p27 = scmp.eq.s32.totalorder %s26, 0
      %s29 = sadd.s32 %s28, 1
      %s30 = scalar_select %p27, %s28, %s29
      %p33 = pneg %p27
      %p34 = scmp.eq.s32.totalorder %s18, 1
      %p35 = por %p33, %p34
      %p36 = scmp.ne.s32.totalorder %s28, %s31
      %p37 = scmp.eq.s32.totalorder %s18, 0
      %p38 = por %p36, %p37
      %p39 = scmp.ne.s32.totalorder %s28, %s31
      %p40 = scmp.eq.s32.totalorder %s23, 1
      %p41 = por %p39, %p40
      %p42 = scmp.ne.s32.totalorder %s31, %s32
      %p43 = scmp.eq.s32.totalorder %s23, 0
      %p44 = por %p42, %p43
      %p45 = scmp.ne.s32.totalorder %s31, %s32
      %p46 = scmp.eq.s32.totalorder %s24, 1
      %p47 = por %p45, %p46
      %p49 = scmp.ne.s32.totalorder %s32, %s48
      %p50 = scmp.eq.s32.totalorder %s24, 0
      %p51 = por %p49, %p50
      %s53 = sadd.s32 %s52, 1
      %p56 = scmp.eq.s32.totalorder %s18, 1
      %p57 = scmp.ne.s32.totalorder %s52, %s54
      %p58 = scmp.eq.s32.totalorder %s18, 0
      %p59 = por %p57, %p58
      %p60 = scmp.ne.s32.totalorder %s52, %s54
      %p61 = scmp.eq.s32.totalorder %s23, 1
      %p62 = por %p60, %p61
      %p63 = scmp.ne.s32.totalorder %s54, %s55
      %p64 = scmp.eq.s32.totalorder %s23, 0
      %p65 = por %p63, %p64
      %p66 = scmp.ne.s32.totalorder %s54, %s55
      %p67 = scmp.eq.s32.totalorder %s24, 1
      %p68 = por %p66, %p67
      %p70 = scmp.ne.s32.totalorder %s55, %s69
      %p71 = scmp.eq.s32.totalorder %s24, 0
      %p72 = por %p70, %p71
      %s74 = sadd.s32 %s73, 1
      %p77 = scmp.eq.s32.totalorder %s18, 1
      %p78 = scmp.ne.s32.totalorder %s73, %s75
      %p79 = scmp.eq.s32.totalorder %s18, 0
      %p80 = por %p78, %p79
      %p81 = scmp.ne.s32.totalorder %s73, %s75
      %p82 = scmp.eq.s32.totalorder %s23, 1
      %p83 = por %p81, %p82
      %p84 = scmp.ne.s32.totalorder %s75, %s76
      %p85 = scmp.eq.s32.totalorder %s23, 0
      %p86 = por %p84, %p85
      %p87 = scmp.ne.s32.totalorder %s75, %s76
      %p88 = scmp.eq.s32.totalorder %s24, 1
      %p89 = por %p87, %p88
      %p91 = scmp.ne.s32.totalorder %s76, %s90
      %p92 = scmp.eq.s32.totalorder %s24, 0
      %p93 = por %p91, %p92
      %s95 = sadd.s32 %s94, 1
      %p98 = scmp.eq.s32.totalorder %s18, 1
      %p99 = scmp.ne.s32.totalorder %s94, %s96
      %p100 = scmp.eq.s32.totalorder %s18, 0
      %p101 = por %p99, %p100
      %p102 = scmp.ne.s32.totalorder %s94, %s96
      %p103 = scmp.eq.s32.totalorder %s23, 1
      %p104 = por %p102, %p103
      %p105 = scmp.ne.s32.totalorder %s96, %s97
      %p106 = scmp.eq.s32.totalorder %s23, 0
      %p107 = por %p105, %p106
      %p108 = scmp.ne.s32.totalorder %s96, %s97
      %p109 = scmp.eq.s32.totalorder %s24, 1
      %p110 = por %p108, %p109
      %p112 = scmp.ne.s32.totalorder %s97, %s111
      %p113 = scmp.eq.s32.totalorder %s24, 0
      %p114 = por %p112, %p113
      %s116 = sadd.s32 %s115, 1
      %p119 = scmp.eq.s32.totalorder %s18, 1
      %p120 = scmp.ne.s32.totalorder %s115, %s117
      %p121 = scmp.eq.s32.totalorder %s18, 0
      %p122 = por %p120, %p121
      %p123 = scmp.ne.s32.totalorder %s115, %s117
      %p124 = scmp.eq.s32.totalorder %s23, 1
      %p125 = por %p123, %p124
      %p126 = scmp.ne.s32.totalorder %s117, %s118
      %p127 = scmp.eq.s32.totalorder %s23, 0
      %p128 = por %p126, %p127
      %p129 = scmp.ne.s32.totalorder %s117, %s118
      %p130 = scmp.eq.s32.totalorder %s24, 1
      %p131 = por %p129, %p130
      %p133 = scmp.ne.s32.totalorder %s118, %s132
      %p134 = scmp.eq.s32.totalorder %s24, 0
      %p135 = por %p133, %p134
      %s137 = sadd.s32 %s136, 1
      %p140 = scmp.eq.s32.totalorder %s18, 1
      %p141 = scmp.ne.s32.totalorder %s136, %s138
      %p142 = scmp.eq.s32.totalorder %s18, 0
      %p143 = por %p141, %p142
      %p144 = scmp.ne.s32.totalorder %s136, %s138
      %p145 = scmp.eq.s32.totalorder %s23, 1
      %p146 = por %p144, %p145
      %p147 = scmp.ne.s32.totalorder %s138, %s139
      %p148 = scmp.eq.s32.totalorder %s23, 0
      %p149 = por %p147, %p148
      %p150 = scmp.ne.s32.totalorder %s138, %s139
      %p151 = scmp.eq.s32.totalorder %s24, 1
      %p152 = por %p150, %p151
      %p154 = scmp.ne.s32.totalorder %s139, %s153
      %p155 = scmp.eq.s32.totalorder %s24, 0
      %p156 = por %p154, %p155
      %s158 = sadd.s32 %s157, 1
      %p161 = scmp.eq.s32.totalorder %s18, 1
      %p162 = scmp.ne.s32.totalorder %s157, %s159
      %p163 = scmp.eq.s32.totalorder %s18, 0
      %p164 = por %p162, %p163
      %p165 = scmp.ne.s32.totalorder %s157, %s159
      %p166 = scmp.eq.s32.totalorder %s23, 1
      %p167 = por %p165, %p166
      %p168 = scmp.ne.s32.totalorder %s159, %s160
      %p169 = scmp.eq.s32.totalorder %s23, 0
      %p170 = por %p168, %p169
      %p171 = scmp.ne.s32.totalorder %s159, %s160
      %p172 = scmp.eq.s32.totalorder %s24, 1
      %p173 = por %p171, %p172
      %p175 = scmp.ne.s32.totalorder %s160, %s174
      %p176 = scmp.eq.s32.totalorder %s24, 0
      %p177 = por %p175, %p176
      %s179 = sadd.s32 %s178, 1
      %p182 = scmp.eq.s32.totalorder %s18, 1
      %p183 = scmp.ne.s32.totalorder %s178, %s180
      %p184 = scmp.eq.s32.totalorder %s18, 0
      %p185 = por %p183, %p184
      %p186 = scmp.ne.s32.totalorder %s178, %s180
      %p187 = scmp.eq.s32.totalorder %s23, 1
      %p188 = por %p186, %p187
      %p189 = scmp.ne.s32.totalorder %s180, %s181
      %p190 = scmp.eq.s32.totalorder %s23, 0
      %p191 = por %p189, %p190
      %p192 = scmp.ne.s32.totalorder %s180, %s181
      %p193 = scmp.eq.s32.totalorder %s24, 1
      %p194 = por %p192, %p193
      %p196 = scmp.ne.s32.totalorder %s181, %s195
      %p197 = scmp.eq.s32.totalorder %s24, 0
      %p198 = por %p196, %p197
      %s200 = sadd.s32 %s199, 1
      %p203 = scmp.eq.s32.totalorder %s18, 1
      %p204 = scmp.ne.s32.totalorder %s199, %s201
      %p205 = scmp.eq.s32.totalorder %s18, 0
      %p206 = por %p204, %p205
      %p207 = scmp.ne.s32.totalorder %s199, %s201
      %p208 = scmp.eq.s32.totalorder %s23, 1
      %p209 = por %p207, %p208
      %p210 = scmp.ne.s32.totalorder %s201, %s202
      %p211 = scmp.eq.s32.totalorder %s23, 0
      %p212 = por %p210, %p211
      %p213 = scmp.ne.s32.totalorder %s201, %s202
      %p214 = scmp.eq.s32.totalorder %s24, 1
      %p215 = por %p213, %p214
      %p217 = scmp.ne.s32.totalorder %s202, %s216
      %p218 = scmp.eq.s32.totalorder %s24, 0
      %p219 = por %p217, %p218
      %s220 = ssub.s32 %s18, %s25
      %p221 = scmp.eq.s32.totalorder %s220, 0
      %s223 = sadd.s32 %s222, 1
      %s224 = scalar_select %p221, %s222, %s223
      %p227 = pneg %p221
      %p228 = scmp.eq.s32.totalorder %s18, 1
      %p229 = por %p227, %p228
      %p230 = scmp.ne.s32.totalorder %s222, %s225
      %p231 = scmp.eq.s32.totalorder %s18, 0
      %p232 = por %p230, %p231
      %p233 = scmp.ne.s32.totalorder %s222, %s225
      %p234 = scmp.eq.s32.totalorder %s23, 1
      %p235 = por %p233, %p234
      %p236 = scmp.ne.s32.totalorder %s225, %s226
      %p237 = scmp.eq.s32.totalorder %s23, 0
      %p238 = por %p236, %p237
      %p239 = scmp.ne.s32.totalorder %s225, %s226
      %p240 = scmp.eq.s32.totalorder %s24, 1
      %p241 = por %p239, %p240
      %p243 = scmp.ne.s32.totalorder %s226, %s242
      %p244 = scmp.eq.s32.totalorder %s24, 0
      %p245 = por %p243, %p244
      %p246 = scmp.le.s32.totalorder 1, %s18
      %p247 = scmp.lt.s32.totalorder %s18, 3
      %p248 = pnand %p246, %p247
      %p249 = pneg %p248
      // Predicated region
      $region9: #{tpu_custom_call.1} parent=5 // pred_check
        _
      $region10: #{tpu_custom_call.1} parent=5 // pred_check_branch
        %251 = sbr.rel (%p248) target = $region12
      $region11: #{tpu_custom_call.1} parent=5 // pred_region
        %s252 = ssub.s32 %s18, 1
        // Predicated region
        $region13: #{tpu_custom_call.1} parent=11 // pred_check
          %p253 = pneg %p65
        $region14: #{tpu_custom_call.1} parent=11 // pred_check_branch
          %255 = sbr.rel (%p253) target = $region16
        $region15: #{tpu_custom_call.1} parent=11 // pred_region
          _
        $region16: #{tpu_custom_call.1} parent=11 // pred_fallthru
          _
        // Predicated region
        $region17: #{tpu_custom_call.1} parent=11 // pred_check
          %p256 = pneg %p86
        $region18: #{tpu_custom_call.1} parent=11 // pred_check_branch
          %258 = sbr.rel (%p256) target = $region20
        $region19: #{tpu_custom_call.1} parent=11 // pred_region
          _
        $region20: #{tpu_custom_call.1} parent=11 // pred_fallthru
          _
        // Predicated region
        $region21: #{tpu_custom_call.1} parent=11 // pred_check
          %p259 = pneg %p107
        $region22: #{tpu_custom_call.1} parent=11 // pred_check_branch
          %261 = sbr.rel (%p259) target = $region24
        $region23: #{tpu_custom_call.1} parent=11 // pred_region
          _
        $region24: #{tpu_custom_call.1} parent=11 // pred_fallthru
          _
        // Predicated region
        $region25: #{tpu_custom_call.1} parent=11 // pred_check
          %p262 = pneg %p128
        $region26: #{tpu_custom_call.1} parent=11 // pred_check_branch
          %264 = sbr.rel (%p262) target = $region28
        $region27: #{tpu_custom_call.1} parent=11 // pred_region
          _
        $region28: #{tpu_custom_call.1} parent=11 // pred_fallthru
          _
        // Predicated region
        $region29: #{tpu_custom_call.1} parent=11 // pred_check
          %p265 = pneg %p149
        $region30: #{tpu_custom_call.1} parent=11 // pred_check_branch
          %267 = sbr.rel (%p265) target = $region32
        $region31: #{tpu_custom_call.1} parent=11 // pred_region
          _
        $region32: #{tpu_custom_call.1} parent=11 // pred_fallthru
          _
        // Predicated region
        $region33: #{tpu_custom_call.1} parent=11 // pred_check
          %p268 = pneg %p170
        $region34: #{tpu_custom_call.1} parent=11 // pred_check_branch
          %270 = sbr.rel (%p268) target = $region36
        $region35: #{tpu_custom_call.1} parent=11 // pred_region
          _
        $region36: #{tpu_custom_call.1} parent=11 // pred_fallthru
          _
        // Predicated region
        $region37: #{tpu_custom_call.1} parent=11 // pred_check
          %p271 = pneg %p191
        $region38: #{tpu_custom_call.1} parent=11 // pred_check_branch
          %273 = sbr.rel (%p271) target = $region40
        $region39: #{tpu_custom_call.1} parent=11 // pred_region
          _
        $region40: #{tpu_custom_call.1} parent=11 // pred_fallthru
          _
        // Predicated region
        $region41: #{tpu_custom_call.1} parent=11 // pred_check
          %p274 = pneg %p212
        $region42: #{tpu_custom_call.1} parent=11 // pred_check_branch
          %276 = sbr.rel (%p274) target = $region44
        $region43: #{tpu_custom_call.1} parent=11 // pred_region
          _
        $region44: #{tpu_custom_call.1} parent=11 // pred_fallthru
          _
      $region12: #{tpu_custom_call.1} parent=5 // pred_fallthru
        _
      %p277 = scmp.lt.s32.totalorder %s18, 2
      // Predicated region
      $region45: #{tpu_custom_call.1} parent=5 // pred_check
        %p278 = pneg %p277
      $region46: #{tpu_custom_call.1} parent=5 // pred_check_branch
        %280 = sbr.rel (%p278) target = $region48
      $region47: #{tpu_custom_call.1} parent=5 // pred_region
        // Predicated region
        $region49: #{tpu_custom_call.1} parent=47 // pred_check
          %p281 = pneg %p38
        $region50: #{tpu_custom_call.1} parent=47 // pred_check_branch
          %283 = sbr.rel (%p281) target = $region52
        $region51: #{tpu_custom_call.1} parent=47 // pred_region
          %p284 = scmp.lt.s32.totalorder %s18, 1
          %s285 = scalar_select %p284, %s18, 1
          %s286 = smul.addr %s285, 8
          %s287 = scalar_lea.vmem %s0, %s286
        $region52: #{tpu_custom_call.1} parent=47 // pred_fallthru
          _
      $region48: #{tpu_custom_call.1} parent=5 // pred_fallthru
        _
      %p288 = scmp.le.s32.totalorder 1, %s18
      %p289 = scmp.lt.s32.totalorder %s18, 3
      %p290 = pnand %p288, %p289
      %p291 = pneg %p290
      // Predicated region
      $region53: #{tpu_custom_call.1} parent=5 // pred_check
        _
      $region54: #{tpu_custom_call.1} parent=5 // pred_check_branch
        %293 = sbr.rel (%p290) target = $region56
      $region55: #{tpu_custom_call.1} parent=5 // pred_region
        %s294 = ssub.s32 %s18, 1
        %p295 = scmp.lt.s32.totalorder %s23, 1
        %s296 = scalar_select %p295, %s23, 1
        %s297 = smul.addr %s296, 8
        %s298 = scalar_lea.vmem %s0, %s297
        %p299 = pneg %p44
        %p300 = pneg %p41
        %p301 = pneg %p65
        %p302 = pneg %p62
        %p303 = pneg %p86
        %p304 = pneg %p83
        %p305 = pneg %p107
        %p306 = pneg %p104
        %p307 = pneg %p128
        %p308 = pneg %p125
        %p309 = pneg %p149
        %p310 = pneg %p146
        %p311 = pneg %p170
        %p312 = pneg %p167
        %p313 = pneg %p191
        %p314 = pneg %p188
        %p315 = pneg %p212
        %p316 = pneg %p209
        %p317 = pneg %p238
        %p318 = pneg %p235
        %s319 = sand.u32 %s225, 1
        %s320 = scalar_lea.sflag [#allocation3], %s319
        %s321 = sand.u32 %s225, 1
        %s322 = smul.addr %s321, 8
        %s323 = scalar_lea.vmem [#allocation2], %s322
        %p324 = scmp.lt.s32.totalorder %s23, 1
        %s325 = scalar_select %p324, %s23, 1
        %s326 = smul.addr %s325, 8
        %s327 = scalar_lea.vmem %s0, %s326
        %v329 = vld [vmem:[%s327] sm:$0xff]
        %v330 = vpack.c.bf16 %v329, %v329
        %v331 = vld [vmem:[%s1] sm:$0xf]
        %v332 = vld [vmem:[%s1 + $0x4] sm:$0xf]
        %v333 = vld [vmem:[%s1 + $0x8] sm:$0xf]
        %v334 = vld [vmem:[%s1 + $0xc] sm:$0xf]
        %v335 = vld [vmem:[%s2] sm:$0x1]
        %v337 = vperm.slane %v335, 0
        %v343 = vunpack.c.l.b16 %v331
        %v344 = vunpack.c.l.b16 %v332
        %v345 = vunpack.c.l.b16 %v333
        %v346 = vunpack.c.l.b16 %v334
        %v347 = vpack.c.b16 %v344, %v343
        %v348 = vpack.c.b16 %v346, %v345
        %vm351 = vcmask 261120
        %v353 = vsel %vm351, %v330, 0
        %355 = vmatpush.bf16.msra.mxu0 0
        %356 = vmatpush.bf16.msra.mxu0 0
        %357 = vmatpush.bf16.msra.mxu0 0
        %358 = vmatpush.bf16.msra.mxu0 0
        %359 = vmatpush.bf16.msra.mxu0 0
        %360 = vmatpush.bf16.msra.mxu0 0
        %361 = vmatpush.bf16.msra.mxu0 %v348
        %362 = vmatpush.bf16.msra.mxu0 %v347
        %363 = vmatmul.bf16.gmra.mxu0 %v353
        %v364 = vpop.f32.mrf.mxu0
        %v365 = vadd.f32 %v337, %v364
        %v366 = vpop.f32.mrf.mxu0
        %367 = vdwg.mxu0
        %v368 = vmax.f32 %v365, 0.0
        %v369 = vpack.c.bf16 %v368, %v368
        %v370 = vld [vmem:[%s3] sm:$0xff]
        %v371 = vld [vmem:[%s3 + $0x8] sm:$0xff]
        %v372 = vld [vmem:[%s3 + $0x10] sm:$0xff]
        %v373 = vld [vmem:[%s3 + $0x18] sm:$0xff]
        %v374 = vld [vmem:[%s3 + $0x20] sm:$0xff]
        %v375 = vld [vmem:[%s3 + $0x28] sm:$0xff]
        %v376 = vld [vmem:[%s3 + $0x30] sm:$0xff]
        %v377 = vld [vmem:[%s3 + $0x38] sm:$0xff]
        %v378 = vld [vmem:[%s4] sm:$0x3]
        %v380 = vperm.slane %v378, 0
        %v381 = vperm.slane %v378, 1
        %v392 = vunpack.c.l.b16 %v370
        %v393 = vunpack.c.h.b16 %v370
        %v394 = vunpack.c.l.b16 %v371
        %v395 = vunpack.c.h.b16 %v371
        %v396 = vunpack.c.l.b16 %v372
        %v397 = vunpack.c.h.b16 %v372
        %v398 = vunpack.c.l.b16 %v373
        %v399 = vunpack.c.h.b16 %v373
        %v400 = vunpack.c.l.b16 %v374
        %v401 = vunpack.c.h.b16 %v374
        %v402 = vunpack.c.l.b16 %v375
        %v403 = vunpack.c.h.b16 %v375
        %v404 = vunpack.c.l.b16 %v376
        %v405 = vunpack.c.h.b16 %v376
        %v406 = vunpack.c.l.b16 %v377
        %v407 = vunpack.c.h.b16 %v377
        %v408 = vpack.c.b16 %v394, %v392
        %v409 = vpack.c.b16 %v395, %v393
        %v410 = vpack.c.b16 %v398, %v396
        %v411 = vpack.c.b16 %v399, %v397
        %v412 = vpack.c.b16 %v402, %v400
        %v413 = vpack.c.b16 %v403, %v401
        %v414 = vpack.c.b16 %v406, %v404
        %v415 = vpack.c.b16 %v407, %v405
        %vm424 = vcmask 523264
        %v426 = vsel %vm424, %v369, 0
        %428 = vmatpush.bf16.msra.mxu0 0
        %429 = vmatpush.bf16.msra.mxu0 0
        %430 = vmatpush.bf16.msra.mxu0 0
        %431 = vmatpush.bf16.msra.mxu0 0
        %432 = vmatpush.bf16.msra.mxu0 %v414
        %433 = vmatpush.bf16.msra.mxu0 %v412
        %434 = vmatpush.bf16.msra.mxu0 %v410
        %435 = vmatpush.bf16.msra.mxu0 %v408
        %436 = vmatmul.bf16.gmra.mxu0 %v426
        %v437 = vpop.f32.mrf.mxu0
        %v438 = vadd.f32 %v380, %v437
        %v439 = vpop.f32.mrf.mxu0
        %440 = vdwg.mxu0
        %441 = vmatpush.bf16.msra.mxu0 0
        %442 = vmatpush.bf16.msra.mxu0 0
        %443 = vmatpush.bf16.msra.mxu0 0
        %444 = vmatpush.bf16.msra.mxu0 0
        %445 = vmatpush.bf16.msra.mxu0 %v415
        %446 = vmatpush.bf16.msra.mxu0 %v413
        %447 = vmatpush.bf16.msra.mxu0 %v411
        %448 = vmatpush.bf16.msra.mxu0 %v409
        %449 = vmatmul.bf16.gmra.mxu0 %v426
        %v450 = vpop.f32.mrf.mxu0
        %v451 = vadd.f32 %v381, %v450
        %v452 = vpop.f32.mrf.mxu0
        %453 = vdwg.mxu0
        %v454 = vmax.f32 %v438, 0.0
        %v455 = vmax.f32 %v451, 0.0
        %v456 = vpack.c.bf16 %v454, %v454
        %v457 = vpack.c.bf16 %v455, %v455
        %v458 = vld [vmem:[%s5] sm:$0xf]
        %v459 = vld [vmem:[%s5 + $0x4] sm:$0xf]
        %v460 = vld [vmem:[%s5 + $0x8] sm:$0xf]
        %v461 = vld [vmem:[%s5 + $0xc] sm:$0xf]
        %v462 = vld [vmem:[%s5 + $0x10] sm:$0xf]
        %v463 = vld [vmem:[%s5 + $0x14] sm:$0xf]
        %v464 = vld [vmem:[%s5 + $0x18] sm:$0xf]
        %v465 = vld [vmem:[%s5 + $0x1c] sm:$0xf]
        %v466 = vld [vmem:[%s5 + $0x20] sm:$0xf]
        %v467 = vld [vmem:[%s5 + $0x24] sm:$0xf]
        %v468 = vld [vmem:[%s5 + $0x28] sm:$0xf]
        %v469 = vld [vmem:[%s5 + $0x2c] sm:$0xf]
        %v470 = vld [vmem:[%s5 + $0x30] sm:$0xf]
        %v471 = vld [vmem:[%s5 + $0x34] sm:$0xf]
        %v472 = vld [vmem:[%s5 + $0x38] sm:$0xf]
        %v473 = vld [vmem:[%s5 + $0x3c] sm:$0xf]
        %v474 = vld [vmem:[%s5 + $0x40] sm:$0xf]
        %v475 = vld [vmem:[%s5 + $0x44] sm:$0xf]
        %v476 = vld [vmem:[%s5 + $0x48] sm:$0xf]
        %v477 = vld [vmem:[%s5 + $0x4c] sm:$0xf]
        %v478 = vld [vmem:[%s5 + $0x50] sm:$0xf]
        %v479 = vld [vmem:[%s5 + $0x54] sm:$0xf]
        %v480 = vld [vmem:[%s5 + $0x58] sm:$0xf]
        %v481 = vld [vmem:[%s5 + $0x5c] sm:$0xf]
        %v482 = vld [vmem:[%s5 + $0x60] sm:$0xf]
        %v483 = vld [vmem:[%s5 + $0x64] sm:$0xf]
        %v484 = vld [vmem:[%s5 + $0x68] sm:$0xf]
        %v485 = vld [vmem:[%s5 + $0x6c] sm:$0xf]
        %v486 = vld [vmem:[%s5 + $0x70] sm:$0xf]
        %v487 = vld [vmem:[%s5 + $0x74] sm:$0xf]
        %v488 = vld [vmem:[%s5 + $0x78] sm:$0xf]
        %v489 = vld [vmem:[%s5 + $0x7c] sm:$0xf]
        %v490 = vld [vmem:[%s6] sm:$0x1]
        %v492 = vperm.slane %v490, 0
        %v526 = vunpack.c.l.b16 %v458
        %v527 = vunpack.c.l.b16 %v459
        %v528 = vunpack.c.l.b16 %v460
        %v529 = vunpack.c.l.b16 %v461
        %v530 = vunpack.c.l.b16 %v462
        %v531 = vunpack.c.l.b16 %v463
        %v532 = vunpack.c.l.b16 %v464
        %v533 = vunpack.c.l.b16 %v465
        %v534 = vunpack.c.l.b16 %v466
        %v535 = vunpack.c.l.b16 %v467
        %v536 = vunpack.c.l.b16 %v468
        %v537 = vunpack.c.l.b16 %v469
        %v538 = vunpack.c.l.b16 %v470
        %v539 = vunpack.c.l.b16 %v471
        %v540 = vunpack.c.l.b16 %v472
        %v541 = vunpack.c.l.b16 %v473
        %v542 = vunpack.c.l.b16 %v474
        %v543 = vunpack.c.l.b16 %v475
        %v544 = vunpack.c.l.b16 %v476
        %v545 = vunpack.c.l.b16 %v477
        %v546 = vunpack.c.l.b16 %v478
        %v547 = vunpack.c.l.b16 %v479
        %v548 = vunpack.c.l.b16 %v480
        %v549 = vunpack.c.l.b16 %v481
        %v550 = vunpack.c.l.b16 %v482
        %v551 = vunpack.c.l.b16 %v483
        %v552 = vunpack.c.l.b16 %v484
        %v553 = vunpack.c.l.b16 %v485
        %v554 = vunpack.c.l.b16 %v486
        %v555 = vunpack.c.l.b16 %v487
        %v556 = vunpack.c.l.b16 %v488
        %v557 = vunpack.c.l.b16 %v489
        %v558 = vpack.c.b16 %v527, %v526
        %v559 = vpack.c.b16 %v529, %v528
        %v560 = vpack.c.b16 %v531, %v530
        %v561 = vpack.c.b16 %v533, %v532
        %v562 = vpack.c.b16 %v535, %v534
        %v563 = vpack.c.b16 %v537, %v536
        %v564 = vpack.c.b16 %v539, %v538
        %v565 = vpack.c.b16 %v541, %v540
        %v566 = vpack.c.b16 %v543, %v542
        %v567 = vpack.c.b16 %v545, %v544
        %v568 = vpack.c.b16 %v547, %v546
        %v569 = vpack.c.b16 %v549, %v548
        %v570 = vpack.c.b16 %v551, %v550
        %v571 = vpack.c.b16 %v553, %v552
        %v572 = vpack.c.b16 %v555, %v554
        %v573 = vpack.c.b16 %v557, %v556
        %590 = vmatpush.bf16.msra.mxu0 %v565
        %591 = vmatpush.bf16.msra.mxu0 %v564
        %592 = vmatpush.bf16.msra.mxu0 %v563
        %593 = vmatpush.bf16.msra.mxu0 %v562
        %594 = vmatpush.bf16.msra.mxu0 %v561
        %595 = vmatpush.bf16.msra.mxu0 %v560
        %596 = vmatpush.bf16.msra.mxu0 %v559
        %597 = vmatpush.bf16.msra.mxu0 %v558
        %598 = vmatmul.bf16.gmra.mxu0 %v456
        %v599 = vpop.f32.mrf.mxu0
        %v600 = vadd.f32 %v492, %v599
        %v601 = vpop.f32.mrf.mxu0
        %602 = vdwg.mxu0
        %603 = vmatpush.bf16.msra.mxu0 %v573
        %604 = vmatpush.bf16.msra.mxu0 %v572
        %605 = vmatpush.bf16.msra.mxu0 %v571
        %606 = vmatpush.bf16.msra.mxu0 %v570
        %607 = vmatpush.bf16.msra.mxu0 %v569
        %608 = vmatpush.bf16.msra.mxu0 %v568
        %609 = vmatpush.bf16.msra.mxu0 %v567
        %610 = vmatpush.bf16.msra.mxu0 %v566
        %611 = vmatmul.bf16.gmra.mxu0 %v457
        %v612 = vpop.f32.mrf.mxu0
        %v613 = vadd.f32 %v600, %v612
        %v614 = vpop.f32.mrf.mxu0
        %615 = vdwg.mxu0
        %v616 = vmax.f32 %v613, 0.0
        %v617 = vpack.c.bf16 %v616, %v616
        %v618 = vld [vmem:[%s7] sm:$0xf]
        %v619 = vld [vmem:[%s7 + $0x4] sm:$0xf]
        %v620 = vld [vmem:[%s7 + $0x8] sm:$0xf]
        %v621 = vld [vmem:[%s7 + $0xc] sm:$0xf]
        %v622 = vld [vmem:[%s7 + $0x10] sm:$0xf]
        %v623 = vld [vmem:[%s7 + $0x14] sm:$0xf]
        %v624 = vld [vmem:[%s8] sm:$0x1]
        %v626 = vperm.slane %v624, 0
        %v634 = vunpack.c.l.b16 %v618
        %v635 = vunpack.c.l.b16 %v619
        %v636 = vunpack.c.l.b16 %v620
        %v637 = vunpack.c.l.b16 %v621
        %v638 = vunpack.c.l.b16 %v622
        %v639 = vunpack.c.l.b16 %v623
        %v640 = vpack.c.b16 %v635, %v634
        %v641 = vpack.c.b16 %v637, %v636
        %v642 = vpack.c.b16 %v639, %v638
        %vm646 = vcmask 392192
        %v648 = vsel %vm646, %v617, 0
        %650 = vmatpush.bf16.msra.mxu0 0
        %651 = vmatpush.bf16.msra.mxu0 0
        %652 = vmatpush.bf16.msra.mxu0 0
        %653 = vmatpush.bf16.msra.mxu0 0
        %654 = vmatpush.bf16.msra.mxu0 0
        %655 = vmatpush.bf16.msra.mxu0 %v642
        %656 = vmatpush.bf16.msra.mxu0 %v641
        %657 = vmatpush.bf16.msra.mxu0 %v640
        %658 = vmatmul.bf16.gmra.mxu0 %v648
        %v659 = vpop.f32.mrf.mxu0
        %v660 = vadd.f32 %v626, %v659
        %v661 = vpop.f32.mrf.mxu0
        %662 = vdwg.mxu0
        %663 = vst [vmem:[%s323] sm:$0xff] %v660
        %s664 = sand.u32 %s225, 1
        %s665 = scalar_lea.sflag [#allocation3], %s664
        %s666 = sand.u32 %s225, 1
        %s667 = smul.addr %s666, 8
        %s668 = scalar_lea.vmem [#allocation2], %s667
        // Predicated region
        $region57: #{tpu_custom_call.1} parent=55 // pred_check
          %p669 = pneg %p235
        $region58: #{tpu_custom_call.1} parent=55 // pred_check_branch
          %671 = sbr.rel (%p669) target = $region60
        $region59: #{tpu_custom_call.1} parent=55 // pred_region
          %673 = vsyncadd %s665, 0
          %s674 = smul.addr %s23, 8
          %s675 = scalar_lea.hbm %s9, %s674
          %s677 = sshll.u32 %s668, 4
          %s678 = int_to_ptr.vmem [resolvable:$true] %s677
          %s679 = sshll.u32 %s675, 4
          %s680 = int_to_ptr.hbm [resolvable:$true] %s679
          %682 = dma.vmem_to_hbm [thread:$0]  %s678, 128, %s680, %s665
        $region60: #{tpu_custom_call.1} parent=55 // pred_fallthru
          _
      $region56: #{tpu_custom_call.1} parent=5 // pred_fallthru
        _
      %p683 = scmp.le.s32.totalorder 2, %s18
      // Predicated region
      $region61: #{tpu_custom_call.1} parent=5 // pred_check
        %p684 = pneg %p683
      $region62: #{tpu_custom_call.1} parent=5 // pred_check_branch
        %686 = sbr.rel (%p684) target = $region64
      $region63: #{tpu_custom_call.1} parent=5 // pred_region
        %s687 = ssub.s32 %s18, 2
        // Predicated region
        $region65: #{tpu_custom_call.1} parent=63 // pred_check
          %p688 = pneg %p241
        $region66: #{tpu_custom_call.1} parent=63 // pred_check_branch
          %690 = sbr.rel (%p688) target = $region68
        $region67: #{tpu_custom_call.1} parent=63 // pred_region
          %s691 = sand.u32 %s226, 1
          %s692 = scalar_lea.sflag [#allocation3], %s691
          %s693 = sand.u32 %s226, 1
          %s694 = smul.addr %s693, 8
          %s695 = scalar_lea.vmem [#allocation2], %s694
          %697 = dma.done %s692, 128
        $region68: #{tpu_custom_call.1} parent=63 // pred_fallthru
          _
      $region64: #{tpu_custom_call.1} parent=5 // pred_fallthru
        _
    $region6: #{tpu_custom_call.1} parent=1 // loop_footer
      %s22 = sadd.s32 1, %s18
    $region7: #{tpu_custom_call.1} parent=1 // loop_footer_branch
      %17 = sbr.rel target = $region3
    $region8: #{tpu_custom_call.1} parent=1 // loop_exit
      _
    %698 = vsyncpa [#allocation3], 1
    %s699 = scalar_lea.sflag [#allocation3], 1
    %700 = vsyncpa %s699, 1

</llo_original>
